<compile_context>
chip_gen: v6e
topology: v6e:2x2x1
jax: 0.10.0
libtpu: 0.0.40
codegen_flags: <defaults>
</compile_context>

<pallas_src>
import jax
import jax.numpy as jnp
from jax.experimental import pallas as pl
from jax.experimental.pallas import tpu as pltpu


def attention_kernel(x_ref, w_ref, att_ref, probs_ref):
    # x_ref:     (TB, S, H) block of the input, storage dtype (f32 or bf16)
    # w_ref:     (1, H)     attention vector (same block every grid step)
    # att_ref:   (TB, H)    attended hidden state (x dtype)
    # probs_ref: (TB, S)    softmax attention weights (f32)
    xt = x_ref[...]                                   # keep storage dtype
    w = w_ref[...].astype(xt.dtype)                   # (1, H), tiny

    # scores[b, s] = sum_h tanh(x[b, s, h]) * w[h]    (f32 accumulation)
    h0 = jnp.tanh(xt)                                 # (TB, S, H)
    scores = jnp.sum(h0 * w[:, None, :], axis=-1, dtype=jnp.float32)  # (TB, S)

    # Softmax over the sequence axis (dim=1 of the PyTorch module), in f32.
    m = jnp.max(scores, axis=1, keepdims=True)        # (TB, 1)
    e = jnp.exp(scores - m)                           # (TB, S)
    denom = jnp.sum(e, axis=1, keepdims=True)         # (TB, 1)
    p = e / denom                                     # exact divide (tiny)
    probs_ref[...] = p.astype(probs_ref.dtype)

    # att_hidden[b, h] = sum_s p[b, s] * x[b, s, h]   (f32 accumulation)
    att = jnp.sum(xt * p.astype(xt.dtype)[:, :, None], axis=1,
                  dtype=jnp.float32)                  # (TB, H)
    att_ref[...] = att.astype(att_ref.dtype)


def _vmem_limit_bytes():
    """~75% of the physical per-core VMEM (v5e/v6e: 128 MiB, v7x: 64 MiB)."""
    cap = 64 * 1024 * 1024                            # conservative default
    try:
        info = pltpu.get_tpu_info()
        cap = int(getattr(info, "vmem_capacity_bytes", cap))
    except Exception:                                 # not on TPU / interpret
        pass
    return (cap * 3) // 4


def _choose_tb(B, S, H, x_itemsize, vmem_budget):
    """Batch-tile size TB.

    Constraints / preferences:
      * per-step VMEM footprint (double-buffered x tile + in-kernel tanh and
        broadcast temporaries + double-buffered outputs) fits `vmem_budget`;
      * TB divides B exactly (no wrapper-side padding, no ragged tail) and is
        a multiple of 8, or TB == B (full-dim exception of the (8,128) rule
        for the (TB, H)/(TB, S) output blocks);
      * >= 4 grid steps when the batch allows it, so both v7x TensorCores get
        at least two pipelined steps each.
    """
    row_in = S * H * x_itemsize                       # one batch row of x tile
    # 2x input (double buffer) + ~3 compute-dtype temporaries (tanh slab and
    # the two broadcast products) + one f32 slab of headroom for upcasts.
    per_row = (2 + 3) * row_in + S * H * 4
    per_row += 2 * (H * x_itemsize + S * 4)           # double-buffered out rows
    per_row += 8 * S * 4                              # scores/exp/probs (f32)
    tb_cap = max(1, vmem_budget // per_row)

    # Multiples of 8 that divide B exactly and fit the VMEM cap.
    cands = [t for t in range(8, min(tb_cap, B) + 1, 8) if B % t == 0]
    good = [t for t in cands if B // t >= 4]          # keep the pipeline full
    if good:
        return max(good)
    if cands:
        return max(cands)
    if B <= tb_cap:
        return B                                      # small batch: one block
    # No suitable divisor and B does not fit: largest multiple-of-8 tile; the
    # ragged last block is masked by Pallas.
    return max(8, (tb_cap // 8) * 8)


def attention_pallas(x, w):
    """x: (B, S, H), w: (H,) -> (att_hidden (B, H) in x.dtype, probs (B, S) f32)."""
    B, S, H = x.shape
    w2d = w.reshape(1, H).astype(jnp.float32)
    itemsize = jnp.dtype(x.dtype).itemsize

    vmem_limit = _vmem_limit_bytes()
    tb = _choose_tb(B, S, H, itemsize, int(vmem_limit * 0.8))
    grid_b = pl.cdiv(B, tb)       # == B // tb except in the ragged fallback

    cost = pl.CostEstimate(
        flops=4 * B * S * H + 6 * B * S,
        transcendentals=B * S * H + B * S,            # tanh + exp
        bytes_accessed=(B * S * H + B * H) * itemsize + H * 4 + B * S * 4,
    )

    att, probs = pl.pallas_call(
        attention_kernel,
        grid=(grid_b,),
        in_specs=[
            pl.BlockSpec((tb, S, H), lambda b: (b, 0, 0)),
            pl.BlockSpec((1, H), lambda b: (0, 0)),
        ],
        out_specs=(
            pl.BlockSpec((tb, H), lambda b: (b, 0)),
            pl.BlockSpec((tb, S), lambda b: (b, 0)),
        ),
        out_shape=(
            jax.ShapeDtypeStruct((B, H), x.dtype),
            jax.ShapeDtypeStruct((B, S), jnp.float32),
        ),
        compiler_params=pltpu.CompilerParams(
            dimension_semantics=("parallel",),
            vmem_limit_bytes=vmem_limit,
        ),
        cost_estimate=cost,
    )(x, w2d)
    return att, probs


def attention_ref(x, w):
    """Pure-JAX reference mirroring the PyTorch forward exactly."""
    h0 = jnp.tanh(x)
    h1 = jnp.matmul(h0, w)                            # (B, S)
    h2 = jax.nn.softmax(h1, axis=1)                   # (B, S)
    alpha = h2[..., None]                             # (B, S, 1)
    att_hidden = jnp.sum(x * alpha, axis=1)           # (B, H)
    return att_hidden, h2


if __name__ == "__main__":
    key = jax.random.PRNGKey(0)
    kx, kw = jax.random.split(key)

    B, S, H = 2, 8, 32
    x = jax.random.normal(kx, (B, S, H), dtype=jnp.float32)
    # The module initializes w = zeros(hidden_dim); use a deterministic random
    # init instead so the softmax / weighted-sum path is exercised non-trivially.
    w = jax.random.normal(kw, (H,), dtype=jnp.float32) * 0.1

    att, probs = attention_pallas(x, w)
    jax.block_until_ready((att, probs))

    att_r, probs_r = attention_ref(x, w)
    assert att.shape == (B, H) and probs.shape == (B, S)
    assert bool(jnp.allclose(att, att_r, atol=1e-4, rtol=1e-4))
    assert bool(jnp.allclose(probs, probs_r, atol=1e-4, rtol=1e-4))

    print("KERNEL_OK")
</pallas_src>

<mosaic_0001>
module attributes {stable_mosaic.version = 11 : i64} {
  func.func @attention_kernel(%arg0: i32, %arg1: memref<2x8x32xf32, #tpu.memory_space<vmem>>, %arg2: memref<1x32xf32, #tpu.memory_space<vmem>>, %arg3: memref<2x32xf32, #tpu.memory_space<vmem>>, %arg4: memref<2x8xf32, #tpu.memory_space<vmem>>) attributes {dimension_semantics = [#tpu.dimension_semantics<parallel>], iteration_bounds = array<i64: 1>, scalar_prefetch = 0 : i64, scratch_operands = 0 : i64, tpu.core_type = #tpu.core_type<tc>, window_params = [{transform_indices = @transform_0, window_bounds = array<i64: 2, 8, 32>}, {pipeline_mode = #tpu.pipeline_mode<synchronous>, transform_indices = @transform_1, window_bounds = array<i64: 1, 32>}, {transform_indices = @transform_2, window_bounds = array<i64: 2, 32>}, {transform_indices = @transform_3, window_bounds = array<i64: 2, 8>}]} {
    %c0 = arith.constant 0 : index
    %c0_0 = arith.constant 0 : index
    %c0_1 = arith.constant 0 : index
    %0 = vector.load %arg1[%c0, %c0_0, %c0_1] : memref<2x8x32xf32, #tpu.memory_space<vmem>>, vector<2x8x32xf32>
    %c0_2 = arith.constant 0 : index
    %c0_3 = arith.constant 0 : index
    %1 = vector.load %arg2[%c0_2, %c0_3] : memref<1x32xf32, #tpu.memory_space<vmem>>, vector<1x32xf32>
    %2 = math.tanh %0 : vector<2x8x32xf32>
    %3 = vector.shape_cast %1 : vector<1x32xf32> to vector<1x1x32xf32>
    %4 = vector.broadcast %3 : vector<1x1x32xf32> to vector<2x8x32xf32>
    %5 = arith.mulf %2, %4 : vector<2x8x32xf32>
    %cst = arith.constant dense<0.000000e+00> : vector<2x8xf32>
    %6 = vector.multi_reduction <add>, %5, %cst [2] : vector<2x8x32xf32> to vector<2x8xf32>
    %cst_4 = arith.constant dense<0xFF800000> : vector<2xf32>
    %7 = vector.multi_reduction <maximumf>, %6, %cst_4 [1] : vector<2x8xf32> to vector<2xf32>
    %8 = vector.shape_cast %7 : vector<2xf32> to vector<2x1xf32>
    %9 = vector.broadcast %8 : vector<2x1xf32> to vector<2x8xf32>
    %10 = arith.subf %6, %9 : vector<2x8xf32>
    %11 = math.exp %10 : vector<2x8xf32>
    %cst_5 = arith.constant dense<0.000000e+00> : vector<2xf32>
    %12 = vector.multi_reduction <add>, %11, %cst_5 [1] : vector<2x8xf32> to vector<2xf32>
    %13 = vector.shape_cast %12 : vector<2xf32> to vector<2x1xf32>
    %14 = vector.broadcast %13 : vector<2x1xf32> to vector<2x8xf32>
    %15 = arith.divf %11, %14 : vector<2x8xf32>
    %c0_6 = arith.constant 0 : index
    %c0_7 = arith.constant 0 : index
    %16 = vector.load %arg4[%c0_6, %c0_7] : memref<2x8xf32, #tpu.memory_space<vmem>>, vector<2x8xf32>
    tpu.vector_store %arg4[%c0_6, %c0_7], %15 {strides = array<i32>} : memref<2x8xf32, #tpu.memory_space<vmem>>, vector<2x8xf32>,
    %17 = vector.shape_cast %15 : vector<2x8xf32> to vector<2x8x1xf32>
    %18 = vector.broadcast %17 : vector<2x8x1xf32> to vector<2x8x32xf32>
    %19 = arith.mulf %0, %18 : vector<2x8x32xf32>
    %cst_8 = arith.constant dense<0.000000e+00> : vector<2x32xf32>
    %20 = vector.multi_reduction <add>, %19, %cst_8 [1] : vector<2x8x32xf32> to vector<2x32xf32>
    %c0_9 = arith.constant 0 : index
    %c0_10 = arith.constant 0 : index
    %21 = vector.load %arg3[%c0_9, %c0_10] : memref<2x32xf32, #tpu.memory_space<vmem>>, vector<2x32xf32>
    tpu.vector_store %arg3[%c0_9, %c0_10], %20 {strides = array<i32>} : memref<2x32xf32, #tpu.memory_space<vmem>>, vector<2x32xf32>,
    return
  }
  func.func @transform_0(%arg0: i32) -> (i32, i32, i32) {
    %c0_i32 = arith.constant 0 : i32
    %c0_i32_0 = arith.constant 0 : i32
    %c0_i32_1 = arith.constant 0 : i32
    return %arg0, %c0_i32, %c0_i32_0 : i32, i32, i32
  }
  func.func @transform_1(%arg0: i32) -> (i32, i32) {
    %c0_i32 = arith.constant 0 : i32
    %c0_i32_0 = arith.constant 0 : i32
    %c0_i32_1 = arith.constant 0 : i32
    return %c0_i32, %c0_i32_0 : i32, i32
  }
  func.func @transform_2(%arg0: i32) -> (i32, i32) {
    %c0_i32 = arith.constant 0 : i32
    %c0_i32_0 = arith.constant 0 : i32
    return %arg0, %c0_i32 : i32, i32
  }
  func.func @transform_3(%arg0: i32) -> (i32, i32) {
    %c0_i32 = arith.constant 0 : i32
    %c0_i32_0 = arith.constant 0 : i32
    return %arg0, %c0_i32 : i32, i32
  }
}

</mosaic_0001>

<llo_original>
// kernel: tpu_custom_call.1
$region0: #{tpu_custom_call.1}
  #allocation0 [shape = 'u32[]', space=smem, size = 0x4, offset = 0x4, fixed_abs, tag = 'smem constant byte address 0x4 - core index']
  #allocation1 [shape = 'u32[144,128]{1,0:T(1,128)}', space=vmem, size = 0x12000, scoped, tag = 'internal scratch']
  %s0 = inlined_call_operand.hbm [shape: f32[2,8,32], index: 0, kind: input, shape index: {}]
  %s1 = inlined_call_operand.vmem [shape: f32[1,32], index: 1, kind: input, shape index: {}]
  %s2 = inlined_call_operand.hbm [shape: f32[2,32], index: 2, kind: output, shape index: {0}]
  %s3 = inlined_call_operand.hbm [shape: f32[2,8], index: 3, kind: output, shape index: {1}]
  %4 = xla_tuple %s2, %s3
  %s5 = sld [smem:[#allocation0]]
  $region30: #{tpu_custom_call.1} parent=0
    _
  %s7 = ssub.s32 1, %s5
  %s8 = scalar_select 0, %s7, %s5
  $region1: #{tpu_custom_call.1} parent=0
    #allocation2 [shape = 'u8[8192]{0}', space=vmem, size = 0x2000, scoped, tag = 'input window, operand 0, single buffered']
    #allocation3 [shape = 's32[1]{0}', space=sflag, size = 0x4, scoped, tag = 'scoped memory for tpu_custom_call.1']
    #allocation4 [shape = 's32[1]{0}', space=sflag, size = 0x4, scoped, tag = 'scoped memory for tpu_custom_call.1']
    #allocation5 [shape = 'u8[1024]{0}', space=vmem, size = 0x400, scoped, tag = 'output window, operand 0, single buffered']
    #allocation6 [shape = 'u8[1024]{0}', space=vmem, size = 0x400, scoped, tag = 'output window, operand 1, single buffered']
    #allocation7 [shape = 's32[1]{0}', space=sflag, size = 0x4, scoped, tag = 'scoped memory for tpu_custom_call.1']
    %9 = vsyncpa [#allocation3], 0
    %10 = vsyncpa [#allocation4], 0
    %11 = vsyncpa [#allocation7], 0
    // Predicated region
    $region2: #{tpu_custom_call.1} parent=1 // pred_check
      _
    $region3: #{tpu_custom_call.1} parent=1 // pred_check_branch
      %13 = sbr.rel (0) target = $region5
    $region4: #{tpu_custom_call.1} parent=1 // pred_region
      %s15 = ssub.s32 256, 256
      %16 = vsyncadd [#allocation3], %s15
      %s17 = sshll.u32 [#allocation2], 4
      %s18 = int_to_ptr.vmem [resolvable:$true] %s17
      %23 = dma.hbm_to_vmem [thread:$0]  %s0, 256, %s18, [#allocation3], 128, 128, 8
    $region5: #{tpu_custom_call.1} parent=1 // pred_fallthru
      _
    // Predicated region
    $region6: #{tpu_custom_call.1} parent=1 // pred_check
      _
    $region7: #{tpu_custom_call.1} parent=1 // pred_check_branch
      %25 = sbr.rel (0) target = $region9
    $region8: #{tpu_custom_call.1} parent=1 // pred_region
      _
    $region9: #{tpu_custom_call.1} parent=1 // pred_fallthru
      _
    // Predicated region
    $region10: #{tpu_custom_call.1} parent=1 // pred_check
      _
    $region11: #{tpu_custom_call.1} parent=1 // pred_check_branch
      %27 = sbr.rel (0) target = $region13
    $region12: #{tpu_custom_call.1} parent=1 // pred_region
      %28 = dma.done [#allocation3], 256
    $region13: #{tpu_custom_call.1} parent=1 // pred_fallthru
      _
    %v29 = vld [vmem:[#allocation2] sm:$0xff]
    %v30 = vld [vmem:[#allocation2 + $0x8] sm:$0xff]
    %v31 = vld [vmem:[%s1] sm:$0x1]
    %v32 = vtanh.pop %v29
    %v33 = vtanh.pop %v30
    %v35 = vlaneseq
    %v36 = vshrl.u32 %v35, 7
    %v37 = vsub.s32 0, %v36
    %v38 = vrot.slane %v31, %v37
    %v40 = vmul.f32 %v32, %v38
    %v41 = vmul.f32 %v33, %v38
    %vm42 = vcmask 261120
    %v43 = vsel %vm42, %v40, 0.0
    %44 = vadd.xlane.f32.xlu0 %v43
    %v45 = vpop.xlane.xlu0 %44
    %v46 = vsel %vm42, %v41, 0.0
    %47 = vadd.xlane.f32.xlu0 %v46
    %v48 = vpop.xlane.xlu0 %47
    %v51 = vlaneseq
    %v52 = vand.u32 %v51, 127
    %v53 = vlaneseq
    %v54 = vshrl.u32 %v53, 7
    %v55 = vsub.s32 %v52, %v54
    %v56 = vrot.slane %v45, %v55
    %v57 = vlaneseq
    %v58 = vshrl.u32 %v57, 7
    %v59 = vsub.s32 %v52, %v58
    %v60 = vrot.slane %v48, %v59
    %vm61 = vcmask 1041409
    %v62 = vsel %vm61, %v60, %v56
    %vm64 = vcmask 58368
    %v65 = vsel %vm64, %v62, -inf
    %66 = vmax.xlane.f32.xlu0 %v65
    %v67 = vpop.xlane.xlu0 %66
    %v69 = vlaneseq
    %v70 = vshrl.u32 %v69, 7
    %v71 = vsub.s32 0, %v70
    %v72 = vrot.slane %v67, %v71
    %v73 = vlaneseq
    %v74 = vshrl.u32 %v73, 7
    %v75 = vsub.s32 1, %v74
    %v76 = vrot.slane %v67, %v75
    %v79 = vsub.f32 %v45, %v72
    %v80 = vsub.f32 %v48, %v76
    %v81 = vmul.f32 %v79, 1.442695
    %v82 = vpow.pop %v81
    %v83 = vmul.f32 %v80, 1.442695
    %v84 = vpow.pop %v83
    %87 = vset.pattern.permute.xlu0 0
    %88 = vperm.xlu0 %87, %v82
    %v89 = vpop.permute.xlu0 %88
    %90 = vset.pattern.permute.xlu0 0
    %91 = vperm.xlu0 %90, %v84
    %v92 = vpop.permute.xlu0 %91
    %v93 = vlaneseq
    %v94 = vshrl.u32 %v93, 7
    %v95 = vsub.s32 %v52, %v94
    %v96 = vrot.slane %v89, %v95
    %v97 = vlaneseq
    %v98 = vshrl.u32 %v97, 7
    %v99 = vsub.s32 %v52, %v98
    %v100 = vrot.slane %v92, %v99
    %v101 = vsel %vm61, %v100, %v96
    %v103 = vsel %vm64, %v101, 0.0
    %104 = vadd.xlane.f32.xlu0 %v103
    %v105 = vpop.xlane.xlu0 %104
    %v107 = vlaneseq
    %v108 = vshrl.u32 %v107, 7
    %v109 = vsub.s32 0, %v108
    %v110 = vrot.slane %v105, %v109
    %v111 = vlaneseq
    %v112 = vshrl.u32 %v111, 7
    %v113 = vsub.s32 1, %v112
    %v114 = vrot.slane %v105, %v113
    %v117 = vrcp.pop %v110
    %v118 = vmul.f32 %v82, %v117
    %v119 = vrcp.pop %v114
    %v120 = vmul.f32 %v84, %v119
    %123 = vset.pattern.permute.xlu0 0
    %124 = vperm.xlu0 %123, %v118
    %v125 = vpop.permute.xlu0 %124
    %126 = vset.pattern.permute.xlu0 0
    %127 = vperm.xlu0 %126, %v120
    %v128 = vpop.permute.xlu0 %127
    %v129 = vlaneseq
    %v130 = vshrl.u32 %v129, 7
    %v131 = vsub.s32 %v52, %v130
    %v132 = vrot.slane %v125, %v131
    %v133 = vlaneseq
    %v134 = vshrl.u32 %v133, 7
    %v135 = vsub.s32 %v52, %v134
    %v136 = vrot.slane %v128, %v135
    %v137 = vsel %vm61, %v136, %v132
    %139 = vst.msk [vmem:[#allocation6] sm:$0x3] %vm64, %v137
    %v142 = vmul.f32 %v29, %v125
    %v143 = vmul.f32 %v30, %v128
    %v144 = vsel %vm42, %v142, 0.0
    %v145 = vrot.slane %v144, 4
    %v146 = vadd.f32 %v144, %v145
    %v147 = vrot.slane %v146, 2
    %v148 = vadd.f32 %v146, %v147
    %v149 = vrot.slane %v148, 1
    %v150 = vadd.f32 %v148, %v149
    %v151 = vsel %vm42, %v143, 0.0
    %v152 = vrot.slane %v151, 4
    %v153 = vadd.f32 %v151, %v152
    %v154 = vrot.slane %v153, 2
    %v155 = vadd.f32 %v153, %v154
    %v156 = vrot.slane %v155, 1
    %v157 = vadd.f32 %v155, %v156
    %v160 = vsel %vm61, %v157, %v150
    %vm162 = vcmask 254976
    %163 = vst.msk [vmem:[#allocation5] sm:$0x3] %vm162, %v160
    // Predicated region
    $region14: #{tpu_custom_call.1} parent=1 // pred_check
      _
    $region15: #{tpu_custom_call.1} parent=1 // pred_check_branch
      %165 = sbr.rel (0) target = $region17
    $region16: #{tpu_custom_call.1} parent=1 // pred_region
      %s167 = ssub.s32 32, 32
      %168 = vsyncadd [#allocation4], %s167
      %s170 = sshll.u32 [#allocation5], 4
      %s171 = int_to_ptr.vmem [resolvable:$true] %s170
      %173 = dma.vmem_to_hbm [thread:$0]  %s171, 32, %s2, [#allocation4]
    $region17: #{tpu_custom_call.1} parent=1 // pred_fallthru
      _
    // Predicated region
    $region18: #{tpu_custom_call.1} parent=1 // pred_check
      _
    $region19: #{tpu_custom_call.1} parent=1 // pred_check_branch
      %175 = sbr.rel (0) target = $region21
    $region20: #{tpu_custom_call.1} parent=1 // pred_region
      %s177 = ssub.s32 32, 32
      %178 = vsyncadd [#allocation7], %s177
      %s180 = sshll.u32 [#allocation6], 4
      %s181 = int_to_ptr.vmem [resolvable:$true] %s180
      %183 = dma.vmem_to_hbm [thread:$0]  %s181, 32, %s3, [#allocation7]
    $region21: #{tpu_custom_call.1} parent=1 // pred_fallthru
      _
    // Predicated region
    $region22: #{tpu_custom_call.1} parent=1 // pred_check
      _
    $region23: #{tpu_custom_call.1} parent=1 // pred_check_branch
      %185 = sbr.rel (0) target = $region25
    $region24: #{tpu_custom_call.1} parent=1 // pred_region
      %186 = dma.done [#allocation4], 32
    $region25: #{tpu_custom_call.1} parent=1 // pred_fallthru
      _
    // Predicated region
    $region26: #{tpu_custom_call.1} parent=1 // pred_check
      _
    $region27: #{tpu_custom_call.1} parent=1 // pred_check_branch
      %188 = sbr.rel (0) target = $region29
    $region28: #{tpu_custom_call.1} parent=1 // pred_region
      %189 = dma.done [#allocation7], 32
    $region29: #{tpu_custom_call.1} parent=1 // pred_fallthru
      _
    %190 = vsyncpa [#allocation3], 1
    %191 = vsyncpa [#allocation4], 1
    %192 = vsyncpa [#allocation7], 1

</llo_original>
